<compile_context>
chip_gen: v6e
topology: v6e:2x2x1
jax: 0.10.0
libtpu: 0.0.40
codegen_flags: <defaults>
</compile_context>

<pallas_src>
import functools

import jax
import jax.numpy as jnp
from jax.experimental import pallas as pl
from jax.experimental.pallas import tpu as pltpu


# ------------------------------ small helpers --------------------------------

def _round_up(x, m):
    return (x + m - 1) // m * m


def _pad_to(x, axis, target):
    pad = target - x.shape[axis]
    if pad == 0:
        return x
    widths = [(0, 0)] * x.ndim
    widths[axis] = (0, pad)
    return jnp.pad(x, widths)


# --------------------- 1x1 conv + PReLU (lane-dense, tiled) -------------------

def _pw_prelu_kernel(w_ref, x_ref, o_ref, *, alpha):
    # w: [Cout, Cin+1] (bias folded as last column), x: [Cin+1, TN] (ones row last)
    y = jnp.dot(w_ref[...], x_ref[...], preferred_element_type=jnp.float32)
    o_ref[...] = jnp.where(y > 0.0, y, y * alpha)


def pointwise_conv_prelu(x_nchw, weight, bias, alpha, tile_n=256):
    """1x1 conv (with bias) + PReLU.  x: [B,Cin,H,W], weight: [Cout,Cin], bias: [Cout].

    Computed as y[Cout, N] = W_aug @ X_aug so the large N=B*H*W dim sits in lanes
    (lane-dense loads/stores), tiled over N with parallel grid semantics.
    """
    B, Cin, H, W = x_nchw.shape
    Cout = weight.shape[0]
    N = B * H * W

    x_flat = jnp.transpose(x_nchw, (1, 0, 2, 3)).reshape(Cin, N).astype(jnp.float32)
    x_aug = jnp.concatenate([x_flat, jnp.ones((1, N), jnp.float32)], axis=0)
    w_aug = jnp.concatenate(
        [jnp.asarray(weight, jnp.float32),
         jnp.asarray(bias, jnp.float32).reshape(Cout, 1)], axis=1)

    tn = min(tile_n, _round_up(N, 128))
    n_pad = _round_up(N, tn)
    x_aug = _pad_to(x_aug, 1, n_pad)
    Ck = Cin + 1

    out = pl.pallas_call(
        functools.partial(_pw_prelu_kernel, alpha=float(alpha)),
        out_shape=jax.ShapeDtypeStruct((Cout, n_pad), jnp.float32),
        grid=(n_pad // tn,),
        in_specs=[
            pl.BlockSpec((Cout, Ck), lambda i: (0, 0)),
            pl.BlockSpec((Ck, tn), lambda i: (0, i)),
        ],
        out_specs=pl.BlockSpec((Cout, tn), lambda i: (0, i)),
        compiler_params=pltpu.CompilerParams(dimension_semantics=("parallel",)),
    )(w_aug, x_aug)

    out = out[:, :N].reshape(Cout, B, H, W)
    return jnp.transpose(out, (1, 0, 2, 3))


# --------------------- attention core (flash-style, tiled) --------------------

def _flash_attn_kernel(xq_ref, wn_ref, vv_ref, o_ref, m_sc, l_sc, acc_sc, *,
                       scale, l_valid, tile_l, mask_cols):
    # xq: [1, Tq, D1p] bf16   query patches (conv_match_1(input) patches)
    # wn: [1, D1p, Tl] bf16   normalized key patches (conv_match_2(small) patches)
    # vv: [1, Tl, D2p] bf16   value patches (conv_assembly(small) patches)
    li = pl.program_id(2)

    @pl.when(li == 0)
    def _():
        m_sc[...] = jnp.full_like(m_sc, -jnp.inf)
        l_sc[...] = jnp.zeros_like(l_sc)
        acc_sc[...] = jnp.zeros_like(acc_sc)

    xq = xq_ref[0]
    wn = wn_ref[0]
    vv = vv_ref[0]

    # attention scores for this (query-tile, key-tile)
    s = jnp.dot(xq, wn, preferred_element_type=jnp.float32) * scale     # [Tq, Tl] f32
    if mask_cols:
        col = jax.lax.broadcasted_iota(jnp.int32, s.shape, 1) + li * tile_l
        s = jnp.where(col < l_valid, s, -1e30)

    # online softmax update (all stats in f32)
    m_prev = m_sc[...]
    m_new = jnp.maximum(m_prev, jnp.max(s, axis=1, keepdims=True))
    a = jnp.exp(m_prev - m_new)
    p = jnp.exp(s - m_new)
    l_sc[...] = a * l_sc[...] + jnp.sum(p, axis=1, keepdims=True)
    acc_sc[...] = a * acc_sc[...] + jnp.dot(
        p.astype(vv.dtype), vv, preferred_element_type=jnp.float32)
    m_sc[...] = m_new

    @pl.when(li == pl.num_programs(2) - 1)
    def _():
        o_ref[0] = acc_sc[...] * pl.reciprocal(l_sc[...], approx=True)


def attention_core(xq, wn_t, vv, l_valid, softmax_scale, tile_q=128, tile_l=128):
    """xq: [B,HWp,D1p] bf16, wn_t: [B,D1p,Lp] bf16, vv: [B,Lp,D2p] bf16 -> [B,HWp,D2p] f32."""
    B, HWp, D1p = xq.shape
    Lp = wn_t.shape[2]
    D2p = vv.shape[2]
    grid = (B, HWp // tile_q, Lp // tile_l)

    kernel = functools.partial(
        _flash_attn_kernel,
        scale=float(softmax_scale),
        l_valid=int(l_valid),
        tile_l=int(tile_l),
        mask_cols=bool(Lp != l_valid),
    )
    # Tile VMEM footprint (Tq=Tl=128, D1p=D2p=128, bf16 ins / f32 out+scratch) is
    # well under the default scoped VMEM limit on v5e/v6e/v7x; re-derive Tq/Tl
    # (and vmem_limit_bytes) for production shapes per generation.
    return pl.pallas_call(
        kernel,
        out_shape=jax.ShapeDtypeStruct((B, HWp, D2p), jnp.float32),
        grid=grid,
        in_specs=[
            pl.BlockSpec((1, tile_q, D1p), lambda b, qi, li: (b, qi, 0)),
            pl.BlockSpec((1, D1p, tile_l), lambda b, qi, li: (b, 0, li)),
            pl.BlockSpec((1, tile_l, D2p), lambda b, qi, li: (b, li, 0)),
        ],
        out_specs=pl.BlockSpec((1, tile_q, D2p), lambda b, qi, li: (b, qi, 0)),
        scratch_shapes=[
            pltpu.VMEM((tile_q, 1), jnp.float32),     # m (running max)
            pltpu.VMEM((tile_q, 1), jnp.float32),     # l (running denom)
            pltpu.VMEM((tile_q, D2p), jnp.float32),   # acc
        ],
        compiler_params=pltpu.CompilerParams(
            dimension_semantics=("parallel", "parallel", "arbitrary")),
    )(xq, wn_t, vv)


# --------------------------------- JAX glue -----------------------------------

def extract_patches_same(x_nchw, k=3):
    """extract_image_patches(..., strides=1, rates=1, padding='same') followed by
    the PyTorch view/permute; returns [B, L=H*W, C*k*k] with feature order (c,ky,kx)."""
    B, C, H, W = x_nchw.shape
    pad = (k - 1) // 2
    xp = jnp.pad(x_nchw, ((0, 0), (0, 0), (pad, pad), (pad, pad)))
    pieces = [xp[:, :, ky:ky + H, kx:kx + W] for ky in range(k) for kx in range(k)]
    stacked = jnp.stack(pieces, axis=2).reshape(B, C, k, k, H, W)
    return jnp.transpose(stacked, (0, 4, 5, 1, 2, 3)).reshape(B, H * W, C * k * k)


def overlap_add_transpose(op, H, W, C, k=3, stride=2, pad=1):
    """conv_transpose2d(yi, wi_center, stride, padding=pad) given per-pixel output
    patches op: [B, H, W, C, k, k]."""
    # TODO(synk): fold this overlap-add into the attention kernel epilogue (or a
    # dedicated Pallas kernel with input_output_aliases) to avoid 9 strided
    # read-modify-write passes over the upsampled output in HBM.
    B = op.shape[0]
    full_h = (H - 1) * stride + k
    full_w = (W - 1) * stride + k
    out = jnp.zeros((B, C, full_h, full_w), jnp.float32)
    for ky in range(k):
        for kx in range(k):
            piece = jnp.transpose(op[:, :, :, :, ky, kx], (0, 3, 1, 2))  # [B,C,H,W]
            out = out.at[:, :,
                         ky:ky + stride * (H - 1) + 1:stride,
                         kx:kx + stride * (W - 1) + 1:stride].add(piece)
    return out[:, :, pad:full_h - pad, pad:full_w - pad]


def cross_scale_attention(inp, small, params, ksize=3, stride=1,
                          softmax_scale=10.0, average=True,
                          tile_q=128, tile_l=128):
    """Forward pass of CrossScaleAttention (average=True branch, stride=1)."""
    # TODO(synk): average=False (hard argmax one-hot) branch not implemented (default is True).
    B, C, H, W = inp.shape
    _, _, h, w = small.shape
    k = ksize
    Cr = params["w_match1"].shape[0]

    match_input = pointwise_conv_prelu(inp, params["w_match1"], params["b_match1"], params["a_match1"])
    embed_w = pointwise_conv_prelu(small, params["w_asm"], params["b_asm"], params["a_asm"])
    ref = pointwise_conv_prelu(small, params["w_match2"], params["b_match2"], params["a_match2"])

    HW, L = H * W, h * w
    D1, D2 = Cr * k * k, C * k * k

    # TODO(synk): at production sizes, fuse the kxk patch formation into the
    # attention kernel (9 statically-shifted matmuls on in-VMEM feature tiles)
    # instead of materializing the 9x patch tensors in HBM.
    xp = extract_patches_same(match_input, k)              # [B, HW, D1] f32
    wp = extract_patches_same(ref, k)                      # [B, L,  D1] f32
    rawp = extract_patches_same(embed_w, k)                # [B, L,  D2] f32

    # per-patch L2 norm with escape_NaN clamp (hoisted out of the kernel, in f32)
    norm = jnp.maximum(jnp.sqrt(jnp.sum(wp * wp, axis=2, keepdims=True)), 1e-4)
    wn_t = jnp.transpose(wp / norm, (0, 2, 1))             # [B, D1, L]

    # pad to MXU/lane-friendly 128 multiples; zero padding does not change the
    # dot products, and padded L columns are masked inside the kernel.
    D1p = _round_up(D1, 128)
    D2p = _round_up(D2, 128)
    Lp = _round_up(L, tile_l)
    HWp = _round_up(HW, tile_q)

    xq = _pad_to(_pad_to(xp, 2, D1p), 1, HWp).astype(jnp.bfloat16)
    wn_p = _pad_to(_pad_to(wn_t, 1, D1p), 2, Lp).astype(jnp.bfloat16)
    vv = _pad_to(_pad_to(rawp, 2, D2p), 1, Lp).astype(jnp.bfloat16)

    out = attention_core(xq, wn_p, vv, L, softmax_scale, tile_q, tile_l)  # [B,HWp,D2p] f32
    op = out[:, :HW, :D2].reshape(B, H, W, C, k, k)
    y = overlap_add_transpose(op, H, W, C, k=k, stride=stride * 2, pad=1)
    return y / 6.0


# ----------------------------------- main -------------------------------------

if __name__ == "__main__":
    B, C, H, W = 2, 4, 16, 16
    h, w = 8, 8          # "small" input (half resolution)
    reduction = 2
    Cr = C // reduction

    key = jax.random.PRNGKey(0)
    ks = jax.random.split(key, 8)
    x = jax.random.normal(ks[0], (B, C, H, W), jnp.float32)
    small = jax.random.normal(ks[1], (B, C, h, w), jnp.float32)

    params = dict(
        w_match1=jax.random.normal(ks[2], (Cr, C), jnp.float32) * 0.1,
        b_match1=jax.random.normal(ks[3], (Cr,), jnp.float32) * 0.01,
        a_match1=0.25,                      # nn.PReLU() default init
        w_match2=jax.random.normal(ks[4], (Cr, C), jnp.float32) * 0.1,
        b_match2=jax.random.normal(ks[5], (Cr,), jnp.float32) * 0.01,
        a_match2=0.25,
        w_asm=jax.random.normal(ks[6], (C, C), jnp.float32) * 0.1,
        b_asm=jax.random.normal(ks[7], (C,), jnp.float32) * 0.01,
        a_asm=0.25,
    )

    out = cross_scale_attention(x, small, params, ksize=3, stride=1, softmax_scale=10.0)
    out = jax.block_until_ready(out)
    # conv_transpose2d(stride=2, padding=1, k=3): output spatial = 2*H - 1
    assert out.shape == (B, C, 2 * H - 1, 2 * W - 1), out.shape
    assert bool(jnp.all(jnp.isfinite(out)))
    print("KERNEL_OK")
</pallas_src>

<mosaic_0001>
module attributes {stable_mosaic.version = 11 : i64} {
  func.func @_pw_prelu_kernel(%arg0: i32, %arg1: memref<2x5xf32, #tpu.memory_space<vmem>>, %arg2: memref<5x256xf32, #tpu.memory_space<vmem>>, %arg3: memref<2x256xf32, #tpu.memory_space<vmem>>) attributes {dimension_semantics = [#tpu.dimension_semantics<parallel>], iteration_bounds = array<i64: 2>, scalar_prefetch = 0 : i64, scratch_operands = 0 : i64, tpu.core_type = #tpu.core_type<tc>, window_params = [{pipeline_mode = #tpu.pipeline_mode<synchronous>, transform_indices = @transform_0, window_bounds = array<i64: 2, 5>}, {transform_indices = @transform_1, window_bounds = array<i64: 5, 256>}, {transform_indices = @transform_2, window_bounds = array<i64: 2, 256>}]} {
    %c0 = arith.constant 0 : index
    %c0_0 = arith.constant 0 : index
    %0 = vector.load %arg1[%c0, %c0_0] : memref<2x5xf32, #tpu.memory_space<vmem>>, vector<2x5xf32>
    %c0_1 = arith.constant 0 : index
    %c0_2 = arith.constant 0 : index
    %1 = vector.load %arg2[%c0_1, %c0_2] : memref<5x256xf32, #tpu.memory_space<vmem>>, vector<5x256xf32>
    %cst = arith.constant dense<0.000000e+00> : vector<2x256xf32>
    %2 = tpu.matmul %0, %1, %cst {dimension_numbers = #tpu.dot_dimension_numbers<[1], [0], [0], [1], [0, 0, 1, 1], [], []>} : vector<2x5xf32>, vector<5x256xf32>, vector<2x256xf32> -> vector<2x256xf32>
    %cst_3 = arith.constant 0.000000e+00 : f32
    %3 = vector.broadcast %cst_3 : f32 to vector<2x256xf32>
    %4 = arith.cmpf ogt, %2, %3 : vector<2x256xf32>
    %cst_4 = arith.constant 2.500000e-01 : f32
    %5 = vector.broadcast %cst_4 : f32 to vector<2x256xf32>
    %6 = arith.mulf %2, %5 : vector<2x256xf32>
    %7 = arith.select %4, %2, %6 : vector<2x256xi1>, vector<2x256xf32>
    %c0_5 = arith.constant 0 : index
    %c0_6 = arith.constant 0 : index
    %8 = vector.load %arg3[%c0_5, %c0_6] : memref<2x256xf32, #tpu.memory_space<vmem>>, vector<2x256xf32>
    tpu.vector_store %arg3[%c0_5, %c0_6], %7 {strides = array<i32>} : memref<2x256xf32, #tpu.memory_space<vmem>>, vector<2x256xf32>,
    return
  }
  func.func @transform_0(%arg0: i32) -> (i32, i32) {
    %c0_i32 = arith.constant 0 : i32
    %c0_i32_0 = arith.constant 0 : i32
    %c0_i32_1 = arith.constant 0 : i32
    return %c0_i32, %c0_i32_0 : i32, i32
  }
  func.func @transform_1(%arg0: i32) -> (i32, i32) {
    %c0_i32 = arith.constant 0 : i32
    %c0_i32_0 = arith.constant 0 : i32
    return %c0_i32, %arg0 : i32, i32
  }
  func.func @transform_2(%arg0: i32) -> (i32, i32) {
    %c0_i32 = arith.constant 0 : i32
    %c0_i32_0 = arith.constant 0 : i32
    return %c0_i32, %arg0 : i32, i32
  }
}

</mosaic_0001>

<llo_original>
// kernel: tpu_custom_call.1
$region0: #{tpu_custom_call.1}
  #allocation0 [shape = 'u32[]', space=smem, size = 0x4, offset = 0x4, fixed_abs, tag = 'smem constant byte address 0x4 - core index']
  #allocation1 [shape = 'u32[144,128]{1,0:T(1,128)}', space=vmem, size = 0x12000, scoped, tag = 'internal scratch']
  %s0 = inlined_call_operand.hbm [shape: f32[2,5], index: 0, kind: input, shape index: {}]
  %s1 = inlined_call_operand.hbm [shape: f32[5,512], index: 1, kind: input, shape index: {}]
  %s2 = inlined_call_operand.hbm [shape: f32[2,512], index: 2, kind: output, shape index: {}]
  %s3 = sld [smem:[#allocation0]]
  $region49: #{tpu_custom_call.1} parent=0
    _
  %s5 = ssub.s32 1, %s3
  %s6 = scalar_select 0, %s5, %s3
  $region1: #{tpu_custom_call.1} parent=0
    #allocation2 [shape = 'u8[1024]{0}', space=vmem, size = 0x400, scoped, tag = 'input window, operand 0, single buffered']
    #allocation3 [shape = 's32[2]{0}', space=sflag, size = 0x8, scoped, tag = 'scoped memory for tpu_custom_call.1']
    #allocation4 [shape = 's32[2]{0}', space=sflag, size = 0x8, scoped, tag = 'scoped memory for tpu_custom_call.1']
    #allocation5 [shape = 'u8[16384]{0}', space=vmem, size = 0x4000, scoped, tag = 'input window, operand 1']
    #allocation6 [shape = 's32[2]{0}', space=sflag, size = 0x8, scoped, tag = 'scoped memory for tpu_custom_call.1']
    #allocation7 [shape = 'u8[4096]{0}', space=vmem, size = 0x1000, scoped, tag = 'output window, operand 0']
    %7 = vsyncpa [#allocation3], 0
    %8 = vsyncpa [#allocation6], 0
    %s9 = scalar_lea.sflag [#allocation6], 1
    %10 = vsyncpa %s9, 0
    %11 = vsyncpa [#allocation4], 0
    %s12 = scalar_lea.sflag [#allocation4], 1
    %13 = vsyncpa %s12, 0
    loop: start=0, step=1, limit=4
    $region2: #{tpu_custom_call.1} parent=1 // loop_pre_header
      _
    $region3: #{tpu_custom_call.1} parent=1 // loop_header
      %s15 = sphi 0, %s19
      %p16 = scmp.ge.s32.totalorder %s15, 4
      %s23 = sphi 0, %s23
      %s25 = sphi 0, %s23
      %s26 = sphi 0, %s25
      %s40 = sphi 0, %s26
      %s46 = sphi 0, %s48
      %s49 = sphi 0, %s46
      %s50 = sphi 0, %s49
      %s66 = sphi 0, %s50
      %s72 = sphi 0, %s74
      %s75 = sphi 0, %s72
      %s76 = sphi 0, %s75
      %s92 = sphi 0, %s76
    $region4: #{tpu_custom_call.1} parent=1 // loop_header_branch
      %18 = sbr.rel (%p16) target = $region8
    $region5: #{tpu_custom_call.1} parent=1 // loop_body
      %s20 = ssub.s32 %s15, 1
      %s21 = ssub.s32 %s15, 2
      %s22 = sadd.s32 %s15, 1
      %s24 = sadd.s32 %s23, 1
      %p27 = scmp.eq.s32.totalorder %s15, 1
      %p28 = scmp.ne.s32.totalorder %s23, %s25
      %p29 = scmp.eq.s32.totalorder %s15, 0
      %p30 = por %p28, %p29
      %p31 = scmp.ne.s32.totalorder %s23, %s25
      %p32 = scmp.eq.s32.totalorder %s20, 1
      %p33 = por %p31, %p32
      %p34 = scmp.ne.s32.totalorder %s25, %s26
      %p35 = scmp.eq.s32.totalorder %s20, 0
      %p36 = por %p34, %p35
      %p37 = scmp.ne.s32.totalorder %s25, %s26
      %p38 = scmp.eq.s32.totalorder %s21, 1
      %p39 = por %p37, %p38
      %p41 = scmp.ne.s32.totalorder %s26, %s40
      %p42 = scmp.eq.s32.totalorder %s21, 0
      %p43 = por %p41, %p42
      %s44 = ssub.s32 %s15, %s22
      %p45 = scmp.eq.s32.totalorder %s44, 0
      %s47 = sadd.s32 %s46, 1
      %s48 = scalar_select %p45, %s46, %s47
      %p51 = pneg %p45
      %p52 = scmp.eq.s32.totalorder %s15, 1
      %p53 = por %p51, %p52
      %p54 = scmp.ne.s32.totalorder %s46, %s49
      %p55 = scmp.eq.s32.totalorder %s15, 0
      %p56 = por %p54, %p55
      %p57 = scmp.ne.s32.totalorder %s46, %s49
      %p58 = scmp.eq.s32.totalorder %s20, 1
      %p59 = por %p57, %p58
      %p60 = scmp.ne.s32.totalorder %s49, %s50
      %p61 = scmp.eq.s32.totalorder %s20, 0
      %p62 = por %p60, %p61
      %p63 = scmp.ne.s32.totalorder %s49, %s50
      %p64 = scmp.eq.s32.totalorder %s21, 1
      %p65 = por %p63, %p64
      %p67 = scmp.ne.s32.totalorder %s50, %s66
      %p68 = scmp.eq.s32.totalorder %s21, 0
      %p69 = por %p67, %p68
      %s70 = ssub.s32 %s15, %s22
      %p71 = scmp.eq.s32.totalorder %s70, 0
      %s73 = sadd.s32 %s72, 1
      %s74 = scalar_select %p71, %s72, %s73
      %p77 = pneg %p71
      %p78 = scmp.eq.s32.totalorder %s15, 1
      %p79 = por %p77, %p78
      %p80 = scmp.ne.s32.totalorder %s72, %s75
      %p81 = scmp.eq.s32.totalorder %s15, 0
      %p82 = por %p80, %p81
      %p83 = scmp.ne.s32.totalorder %s72, %s75
      %p84 = scmp.eq.s32.totalorder %s20, 1
      %p85 = por %p83, %p84
      %p86 = scmp.ne.s32.totalorder %s75, %s76
      %p87 = scmp.eq.s32.totalorder %s20, 0
      %p88 = por %p86, %p87
      %p89 = scmp.ne.s32.totalorder %s75, %s76
      %p90 = scmp.eq.s32.totalorder %s21, 1
      %p91 = por %p89, %p90
      %p93 = scmp.ne.s32.totalorder %s76, %s92
      %p94 = scmp.eq.s32.totalorder %s21, 0
      %p95 = por %p93, %p94
      %p96 = scmp.le.s32.totalorder 1, %s15
      %p97 = scmp.lt.s32.totalorder %s15, 3
      %p98 = pnand %p96, %p97
      %p99 = pneg %p98
      // Predicated region
      $region9: #{tpu_custom_call.1} parent=5 // pred_check
        _
      $region10: #{tpu_custom_call.1} parent=5 // pred_check_branch
        %101 = sbr.rel (%p98) target = $region12
      $region11: #{tpu_custom_call.1} parent=5 // pred_region
        %s102 = ssub.s32 %s15, 1
        // Predicated region
        $region13: #{tpu_custom_call.1} parent=11 // pred_check
          %p103 = pneg %p36
        $region14: #{tpu_custom_call.1} parent=11 // pred_check_branch
          %105 = sbr.rel (%p103) target = $region16
        $region15: #{tpu_custom_call.1} parent=11 // pred_region
          %s107 = ssub.s32 32, 32
          %108 = vsyncadd [#allocation3], %s107
          %s110 = sshll.u32 [#allocation2], 4
          %s111 = int_to_ptr.vmem [resolvable:$true] %s110
          %113 = dma.hbm_to_vmem [thread:$0]  %s0, 32, %s111, [#allocation3]
        $region16: #{tpu_custom_call.1} parent=11 // pred_fallthru
          _
      $region12: #{tpu_custom_call.1} parent=5 // pred_fallthru
        _
      %p114 = scmp.lt.s32.totalorder %s15, 2
      // Predicated region
      $region17: #{tpu_custom_call.1} parent=5 // pred_check
        %p115 = pneg %p114
      $region18: #{tpu_custom_call.1} parent=5 // pred_check_branch
        %117 = sbr.rel (%p115) target = $region20
      $region19: #{tpu_custom_call.1} parent=5 // pred_region
        // Predicated region
        $region21: #{tpu_custom_call.1} parent=19 // pred_check
          %p118 = pneg %p56
        $region22: #{tpu_custom_call.1} parent=19 // pred_check_branch
          %120 = sbr.rel (%p118) target = $region24
        $region23: #{tpu_custom_call.1} parent=19 // pred_region
          %s121 = sand.u32 %s46, 1
          %s122 = scalar_lea.sflag [#allocation6], %s121
          %s123 = sand.u32 %s46, 1
          %s124 = smul.addr %s123, 16
          %s125 = scalar_lea.vmem [#allocation5], %s124
          %s126 = smul.u32 2, %s15
          %s128 = ssub.s32 256, 256
          %129 = vsyncadd %s122, %s128
          %s130 = smul.addr %s126, 128
          %s131 = scalar_lea.hbm %s1, %s130
          %s133 = sshll.u32 %s125, 4
          %s134 = int_to_ptr.vmem [resolvable:$true] %s133
          %136 = dma.hbm_to_vmem [thread:$0]  %s131, 256, %s134, %s122
        $region24: #{tpu_custom_call.1} parent=19 // pred_fallthru
          _
      $region20: #{tpu_custom_call.1} parent=5 // pred_fallthru
        _
      %p137 = scmp.le.s32.totalorder 1, %s15
      %p138 = scmp.lt.s32.totalorder %s15, 3
      %p139 = pnand %p137, %p138
      %p140 = pneg %p139
      // Predicated region
      $region25: #{tpu_custom_call.1} parent=5 // pred_check
        _
      $region26: #{tpu_custom_call.1} parent=5 // pred_check_branch
        %142 = sbr.rel (%p139) target = $region28
      $region27: #{tpu_custom_call.1} parent=5 // pred_region
        %s143 = ssub.s32 %s15, 1
        // Predicated region
        $region29: #{tpu_custom_call.1} parent=27 // pred_check
          %p144 = pneg %p36
        $region30: #{tpu_custom_call.1} parent=27 // pred_check_branch
          %146 = sbr.rel (%p144) target = $region32
        $region31: #{tpu_custom_call.1} parent=27 // pred_region
          %147 = dma.done [#allocation3], 32
        $region32: #{tpu_custom_call.1} parent=27 // pred_fallthru
          _
        %s148 = sand.u32 %s49, 1
        %s149 = scalar_lea.sflag [#allocation6], %s148
        %s150 = sand.u32 %s49, 1
        %s151 = smul.addr %s150, 16
        %s152 = scalar_lea.vmem [#allocation5], %s151
        // Predicated region
        $region33: #{tpu_custom_call.1} parent=27 // pred_check
          %p153 = pneg %p62
        $region34: #{tpu_custom_call.1} parent=27 // pred_check_branch
          %155 = sbr.rel (%p153) target = $region36
        $region35: #{tpu_custom_call.1} parent=27 // pred_region
          %156 = dma.done %s149, 256
        $region36: #{tpu_custom_call.1} parent=27 // pred_fallthru
          _
        %p157 = pneg %p36
        %p158 = pneg %p33
        %s159 = sand.u32 %s49, 1
        %s160 = scalar_lea.sflag [#allocation6], %s159
        %s161 = sand.u32 %s49, 1
        %s162 = smul.addr %s161, 16
        %s163 = scalar_lea.vmem [#allocation5], %s162
        %p164 = pneg %p62
        %p165 = pneg %p59
        %p166 = pneg %p88
        %p167 = pneg %p85
        %s168 = sand.u32 %s75, 1
        %s169 = scalar_lea.sflag [#allocation4], %s168
        %s170 = sand.u32 %s75, 1
        %s171 = smul.addr %s170, 4
        %s172 = scalar_lea.vmem [#allocation7], %s171
        %s173 = smul.u32 2, %s20
        %s174 = smul.u32 2, %s20
        %v175 = vld [vmem:[#allocation2] sm:$0x3]
        %v176 = vld [vmem:[%s152] sm:$0x1f]
        %v177 = vld [vmem:[%s152 + $0x8] sm:$0x1f]
        %vm178 = vcmask 39936
        %v180 = vsel %vm178, %v175, 0
        %vm182 = vcmask 1044480
        %v184 = vsel %vm182, %v176, 0
        %v187 = vsel %vm182, %v177, 0
        %189 = vmatprep.subr.mxu0 0.0
        %190 = vmatpush1.msra.mxu0 0.0
        %191 = vmatprep.subr.mxu0 0.0
        %192 = vmatpush1.msra.mxu0 0.0
        %193 = vmatprep.subr.mxu0 0.0
        %194 = vmatpush1.msra.mxu0 0.0
        %195 = vmatprep.subr.mxu0 0.0
        %196 = vmatpush1.msra.mxu0 0.0
        %197 = vmatprep.subr.mxu0 0.0
        %198 = vmatpush1.msra.mxu0 0.0
        %199 = vmatprep.subr.mxu0 0.0
        %200 = vmatpush1.msra.mxu0 0.0
        %201 = vmatprep.subr.mxu0 0.0
        %202 = vmatpush1.msra.mxu0 0.0
        %203 = vmatprep.subr.mxu0 0.0
        %204 = vmatpush1.msra.mxu0 0.0
        %205 = vmatprep.subr.mxu0 0.0
        %206 = vmatpush1.msra.mxu0 0.0
        %207 = vmatprep.subr.mxu0 0.0
        %208 = vmatpush1.msra.mxu0 0.0
        %209 = vmatprep.subr.mxu0 0.0
        %210 = vmatpush1.msra.mxu0 0.0
        %211 = vmatprep.subr.mxu0 0.0
        %212 = vmatpush1.msra.mxu0 0.0
        %213 = vmatprep.subr.mxu0 0.0
        %214 = vmatpush1.msra.mxu0 0.0
        %215 = vmatprep.subr.mxu0 0.0
        %216 = vmatpush1.msra.mxu0 0.0
        %217 = vmatprep.subr.mxu0 0.0
        %218 = vmatpush1.msra.mxu0 0.0
        %219 = vmatprep.subr.mxu0 %v187
        %220 = vmatpush1.msra.mxu0 %v184
        %221 = vmatprep.subr.mxu0 0.0
        %222 = vmatpush2.msra.mxu0 0.0
        %223 = vmatprep.subr.mxu0 0.0
        %224 = vmatpush2.msra.mxu0 0.0
        %225 = vmatprep.subr.mxu0 0.0
        %226 = vmatpush2.msra.mxu0 0.0
        %227 = vmatprep.subr.mxu0 0.0
        %228 = vmatpush2.msra.mxu0 0.0
        %229 = vmatprep.subr.mxu0 0.0
        %230 = vmatpush2.msra.mxu0 0.0
        %231 = vmatprep.subr.mxu0 0.0
        %232 = vmatpush2.msra.mxu0 0.0
        %233 = vmatprep.subr.mxu0 0.0
        %234 = vmatpush2.msra.mxu0 0.0
        %235 = vmatprep.subr.mxu0 0.0
        %236 = vmatpush2.msra.mxu0 0.0
        %237 = vmatprep.subr.mxu0 0.0
        %238 = vmatpush2.msra.mxu0 0.0
        %239 = vmatprep.subr.mxu0 0.0
        %240 = vmatpush2.msra.mxu0 0.0
        %241 = vmatprep.subr.mxu0 0.0
        %242 = vmatpush2.msra.mxu0 0.0
        %243 = vmatprep.subr.mxu0 0.0
        %244 = vmatpush2.msra.mxu0 0.0
        %245 = vmatprep.subr.mxu0 0.0
        %246 = vmatpush2.msra.mxu0 0.0
        %247 = vmatprep.subr.mxu0 0.0
        %248 = vmatpush2.msra.mxu0 0.0
        %249 = vmatprep.subr.mxu0 0.0
        %250 = vmatpush2.msra.mxu0 0.0
        %251 = vmatprep.subr.mxu0 0.0
        %252 = vmatpush2.msra.mxu0 0.0
        %253 = vmatprep.mubr.f32.mxu0 0.0
        %254 = vmatmul.mubr.f32.gmra.mxu0 %v180
        %v255 = vpop.f32.mrf.mxu0
        %v256 = vadd.f32 0.0, %v255
        %v257 = vpop.f32.mrf.mxu0
        %v258 = vadd.f32 0.0, %v257
        %259 = vdwg.mxu0
        %vm260 = vcmp.gt.f32.partialorder %v256, 0.0
        %vm261 = vcmp.gt.f32.partialorder %v258, 0.0
        %v262 = vmul.f32 %v256, 0.25
        %v263 = vmul.f32 %v258, 0.25
        %v264 = vsel %vm260, %v256, %v262
        %v265 = vsel %vm261, %v258, %v263
        %v268 = vcombine.low %v264, %v265
        %v270 = vunpack.c.l.s4 1983009808
        %v271 = vunpack.c.0.s8 %v270
        %v272 = vlaneseq
        %v273 = vshrl.u32 %v272, 7
        %v274 = vsub.s32 %v271, %v273
        %v275 = vrot.slane %v268, %v274
        %277 = vst [vmem:[%s172] sm:$0xf] %v275
        %s278 = sand.u32 %s75, 1
        %s279 = scalar_lea.sflag [#allocation4], %s278
        %s280 = sand.u32 %s75, 1
        %s281 = smul.addr %s280, 4
        %s282 = scalar_lea.vmem [#allocation7], %s281
        // Predicated region
        $region37: #{tpu_custom_call.1} parent=27 // pred_check
          %p283 = pneg %p85
        $region38: #{tpu_custom_call.1} parent=27 // pred_check_branch
          %285 = sbr.rel (%p283) target = $region40
        $region39: #{tpu_custom_call.1} parent=27 // pred_region
          %s286 = smul.u32 2, %s20
          %s288 = ssub.s32 64, 64
          %289 = vsyncadd %s279, %s288
          %s290 = smul.addr %s286, 32
          %s291 = scalar_lea.hbm %s2, %s290
          %s293 = sshll.u32 %s282, 4
          %s294 = int_to_ptr.vmem [resolvable:$true] %s293
          %296 = dma.vmem_to_hbm [thread:$0]  %s294, 64, %s291, %s279
        $region40: #{tpu_custom_call.1} parent=27 // pred_fallthru
          _
      $region28: #{tpu_custom_call.1} parent=5 // pred_fallthru
        _
      %p297 = scmp.le.s32.totalorder 2, %s15
      // Predicated region
      $region41: #{tpu_custom_call.1} parent=5 // pred_check
        %p298 = pneg %p297
      $region42: #{tpu_custom_call.1} parent=5 // pred_check_branch
        %300 = sbr.rel (%p298) target = $region44
      $region43: #{tpu_custom_call.1} parent=5 // pred_region
        %s301 = ssub.s32 %s15, 2
        // Predicated region
        $region45: #{tpu_custom_call.1} parent=43 // pred_check
          %p302 = pneg %p91
        $region46: #{tpu_custom_call.1} parent=43 // pred_check_branch
          %304 = sbr.rel (%p302) target = $region48
        $region47: #{tpu_custom_call.1} parent=43 // pred_region
          %s305 = sand.u32 %s76, 1
          %s306 = scalar_lea.sflag [#allocation4], %s305
          %s307 = sand.u32 %s76, 1
          %s308 = smul.addr %s307, 4
          %s309 = scalar_lea.vmem [#allocation7], %s308
          %310 = dma.done %s306, 64
        $region48: #{tpu_custom_call.1} parent=43 // pred_fallthru
          _
      $region44: #{tpu_custom_call.1} parent=5 // pred_fallthru
        _
    $region6: #{tpu_custom_call.1} parent=1 // loop_footer
      %s19 = sadd.s32 1, %s15
    $region7: #{tpu_custom_call.1} parent=1 // loop_footer_branch
      %14 = sbr.rel target = $region3
    $region8: #{tpu_custom_call.1} parent=1 // loop_exit
      _
    %311 = vsyncpa [#allocation3], 1
    %s312 = scalar_lea.sflag [#allocation3], 1
    %313 = vsyncpa %s312, 1
    %314 = vsyncpa [#allocation6], 1
    %s315 = scalar_lea.sflag [#allocation6], 1
    %316 = vsyncpa %s315, 1
    %317 = vsyncpa [#allocation4], 1
    %s318 = scalar_lea.sflag [#allocation4], 1
    %319 = vsyncpa %s318, 1

</llo_original>
